<compile_context>
chip_gen: v5e
topology: v5e:2x2
jax: 0.10.0
libtpu: 0.0.40
codegen_flags: <defaults>
</compile_context>

<pallas_src>
import functools

import jax
import jax.numpy as jnp
from jax.experimental import pallas as pl
from jax.experimental.pallas import tpu as pltpu  # noqa: F401  (TPU backend)


def _mi_kernel(rgb_ref, pt_ref,
               w_rgb_ref, b_rgb_ref, w_pt_ref, b_pt_ref,
               eps_r_ref, eps_p_ref,
               loss_ref, z_rgb_ref, z_pt_ref,
               *, B, H, N):
    eps_norm = 1e-6

    w_rgb = w_rgb_ref[...]   # (2H, C)
    b_rgb = b_rgb_ref[...]   # (2H, 1)
    w_pt = w_pt_ref[...]
    b_pt = b_pt_ref[...]

    ce_acc = jnp.zeros((1, N), jnp.float32)   # lane-resident partial sums
    kl_acc = jnp.zeros((1, N), jnp.float32)

    for b in range(B):   # B is small and static: unrolled in-kernel loop
        x_rgb = rgb_ref[b].astype(jnp.float32)   # (C, N)
        x_pt = pt_ref[b].astype(jnp.float32)

        # L2 normalize over channel dim (PyTorch dim=1 -> axis 0 here)
        x_rgb = x_rgb * jax.lax.rsqrt(
            jnp.sum(x_rgb * x_rgb, axis=0, keepdims=True) + eps_norm)
        x_pt = x_pt * jax.lax.rsqrt(
            jnp.sum(x_pt * x_pt, axis=0, keepdims=True) + eps_norm)

        # Fused mu/logvar 1x1 conv: (2H, C) @ (C, N) + (2H, 1), then tanh.
        h_rgb = jnp.tanh(
            jnp.dot(w_rgb, x_rgb, preferred_element_type=jnp.float32) + b_rgb)
        h_pt = jnp.tanh(
            jnp.dot(w_pt, x_pt, preferred_element_type=jnp.float32) + b_pt)

        mu_rgb, lv_rgb = h_rgb[:H], h_rgb[H:]    # (H, N) each
        mu_pt, lv_pt = h_pt[:H], h_pt[H:]

        # reparametrize: std = exp(0.5*logvar); z = eps*std + mu
        std_rgb = jnp.exp(0.5 * lv_rgb)
        std_pt = jnp.exp(0.5 * lv_pt)
        z_rgb = eps_r_ref[b] * std_rgb + mu_rgb
        z_pt = eps_p_ref[b] * std_pt + mu_pt
        z_rgb_ref[b] = z_rgb.astype(z_rgb_ref.dtype)
        z_pt_ref[b] = z_pt.astype(z_pt_ref.dtype)

        # Binary cross entropy (both directions), logs clamped at -100 like torch.
        p_rgb = jax.nn.sigmoid(z_rgb)
        p_pt = jax.nn.sigmoid(z_pt)
        logp_rgb_raw = jnp.log(p_rgb)
        logp_pt_raw = jnp.log(p_pt)
        logp_rgb = jnp.maximum(logp_rgb_raw, -100.0)
        logp_pt = jnp.maximum(logp_pt_raw, -100.0)
        # log(1 - sigmoid(z)) == log(sigmoid(z)) - z  (saves a second log)
        log1mp_rgb = jnp.maximum(logp_rgb_raw - z_rgb, -100.0)
        log1mp_pt = jnp.maximum(logp_pt_raw - z_pt, -100.0)

        ce = (-(p_pt * logp_rgb + (1.0 - p_pt) * log1mp_rgb)
              - (p_rgb * logp_pt + (1.0 - p_rgb) * log1mp_pt))

        # KL between Normal(mu, scale=exp(logvar)) in both directions.
        sig_rgb = std_rgb * std_rgb          # exp(logvar) = scale
        sig_pt = std_pt * std_pt
        var_rgb = sig_rgb * sig_rgb          # scale^2
        var_pt = sig_pt * sig_pt
        dmu2 = (mu_rgb - mu_pt) ** 2
        dlv = lv_pt - lv_rgb
        inv2var_rgb = pl.reciprocal(2.0 * var_rgb, approx=True)
        inv2var_pt = pl.reciprocal(2.0 * var_pt, approx=True)
        kl_both = ((dlv + (var_rgb + dmu2) * inv2var_pt - 0.5)
                   + (-dlv + (var_pt + dmu2) * inv2var_rgb - 0.5))

        ce_acc = ce_acc + jnp.sum(ce, axis=0, keepdims=True)       # (1, N)
        kl_acc = kl_acc + jnp.sum(kl_both, axis=0, keepdims=True)  # (1, N)

    # Single final cross-lane reduction + scale by precomputed reciprocals.
    ce_sum = jnp.sum(ce_acc, keepdims=True)   # (1, 1)
    kl_sum = jnp.sum(kl_acc, keepdims=True)   # (1, 1)
    inv_nel = 1.0 / float(B * H * N)
    inv_nbh = 1.0 / float(B * H)
    inv_n = 1.0 / float(N)
    loss_ref[...] = (ce_sum * inv_nel - kl_sum * inv_nbh) * inv_n


def mutual_info_reg_3d(rgb_feat, point_feat, params, eps_rgb, eps_point):
    B, C, N = rgb_feat.shape
    H = params["w_rgb_mu"].shape[0]

    # Fuse mu / logvar weights per modality: (2H, C) weight, (2H, 1) bias.
    w_rgb = jnp.concatenate([params["w_rgb_mu"], params["w_rgb_logvar"]], axis=0)
    b_rgb = jnp.concatenate([params["b_rgb_mu"], params["b_rgb_logvar"]], axis=0)
    w_pt = jnp.concatenate([params["w_point_mu"], params["w_point_logvar"]], axis=0)
    b_pt = jnp.concatenate([params["b_point_mu"], params["b_point_logvar"]], axis=0)

    kernel = functools.partial(_mi_kernel, B=B, H=H, N=N)

    # Single-step kernel: whole (tiny) problem lives in VMEM; no grid, no
    # cross-step accumulators.
    loss, z_rgb, z_pt = pl.pallas_call(
        kernel,
        out_shape=(
            jax.ShapeDtypeStruct((1, 1), jnp.float32),
            jax.ShapeDtypeStruct((B, H, N), jnp.float32),
            jax.ShapeDtypeStruct((B, H, N), jnp.float32),
        ),
    )(rgb_feat, point_feat, w_rgb, b_rgb, w_pt, b_pt, eps_rgb, eps_point)
    return loss[0, 0], z_rgb, z_pt


def init_params(key, input_channels, hidden_channels):
    keys = jax.random.split(key, 8)

    def w(k):
        return (jax.random.normal(k, (hidden_channels, input_channels),
                                  dtype=jnp.float32) * 0.1)

    def bias(k):
        return (jax.random.normal(k, (hidden_channels, 1),
                                  dtype=jnp.float32) * 0.1)

    return {
        "w_rgb_mu": w(keys[0]),       "b_rgb_mu": bias(keys[1]),
        "w_rgb_logvar": w(keys[2]),   "b_rgb_logvar": bias(keys[3]),
        "w_point_mu": w(keys[4]),     "b_point_mu": bias(keys[5]),
        "w_point_logvar": w(keys[6]), "b_point_logvar": bias(keys[7]),
    }


if __name__ == "__main__":
    B, C, H, N = 2, 8, 8, 128   # batch, input_channels, hidden_channels, n points

    key = jax.random.PRNGKey(0)
    k_rgb, k_pt, k_params, k_eps_r, k_eps_p = jax.random.split(key, 5)

    rgb_feat = jax.random.normal(k_rgb, (B, C, N), dtype=jnp.float32)
    point_feat = jax.random.normal(k_pt, (B, C, N), dtype=jnp.float32)
    params = init_params(k_params, C, H)

    # torch.cuda.FloatTensor(...).normal_() replaced by deterministic JAX normals
    eps_rgb = jax.random.normal(k_eps_r, (B, H, N), dtype=jnp.float32)
    eps_point = jax.random.normal(k_eps_p, (B, H, N), dtype=jnp.float32)

    loss, z_rgb, z_point = mutual_info_reg_3d(
        rgb_feat, point_feat, params, eps_rgb, eps_point)
    jax.block_until_ready((loss, z_rgb, z_point))

    assert z_rgb.shape == (B, H, N) and z_point.shape == (B, H, N)
    assert jnp.isfinite(loss) and bool(jnp.all(jnp.isfinite(z_rgb)))
    assert bool(jnp.all(jnp.isfinite(z_point)))
    print("KERNEL_OK")
</pallas_src>

<mosaic_0001>
module attributes {stable_mosaic.version = 11 : i64} {
  func.func @_mi_kernel(%arg0: memref<2x8x128xf32, #tpu.memory_space<vmem>>, %arg1: memref<2x8x128xf32, #tpu.memory_space<vmem>>, %arg2: memref<16x8xf32, #tpu.memory_space<vmem>>, %arg3: memref<16x1xf32, #tpu.memory_space<vmem>>, %arg4: memref<16x8xf32, #tpu.memory_space<vmem>>, %arg5: memref<16x1xf32, #tpu.memory_space<vmem>>, %arg6: memref<2x8x128xf32, #tpu.memory_space<vmem>>, %arg7: memref<2x8x128xf32, #tpu.memory_space<vmem>>, %arg8: memref<1x1xf32, #tpu.memory_space<vmem>>, %arg9: memref<2x8x128xf32, #tpu.memory_space<vmem>>, %arg10: memref<2x8x128xf32, #tpu.memory_space<vmem>>) attributes {dimension_semantics = [], scalar_prefetch = 0 : i64, scratch_operands = 0 : i64, tpu.core_type = #tpu.core_type<tc>} {
    %c0 = arith.constant 0 : index
    %c0_0 = arith.constant 0 : index
    %0 = vector.load %arg2[%c0, %c0_0] : memref<16x8xf32, #tpu.memory_space<vmem>>, vector<16x8xf32>
    %c0_1 = arith.constant 0 : index
    %c0_2 = arith.constant 0 : index
    %1 = vector.load %arg3[%c0_1, %c0_2] : memref<16x1xf32, #tpu.memory_space<vmem>>, vector<16x1xf32>
    %c0_3 = arith.constant 0 : index
    %c0_4 = arith.constant 0 : index
    %2 = vector.load %arg4[%c0_3, %c0_4] : memref<16x8xf32, #tpu.memory_space<vmem>>, vector<16x8xf32>
    %c0_5 = arith.constant 0 : index
    %c0_6 = arith.constant 0 : index
    %3 = vector.load %arg5[%c0_5, %c0_6] : memref<16x1xf32, #tpu.memory_space<vmem>>, vector<16x1xf32>
    %cst = arith.constant 0.000000e+00 : f32
    %4 = vector.broadcast %cst : f32 to vector<1x128xf32>
    %cst_7 = arith.constant 0.000000e+00 : f32
    %5 = vector.broadcast %cst_7 : f32 to vector<1x128xf32>
    %c0_8 = arith.constant 0 : index
    %c0_9 = arith.constant 0 : index
    %c0_10 = arith.constant 0 : index
    %6 = vector.load %arg0[%c0_8, %c0_9, %c0_10] : memref<2x8x128xf32, #tpu.memory_space<vmem>>, vector<1x8x128xf32>
    %7 = vector.shape_cast %6 : vector<1x8x128xf32> to vector<8x128xf32>
    %c0_11 = arith.constant 0 : index
    %c0_12 = arith.constant 0 : index
    %c0_13 = arith.constant 0 : index
    %8 = vector.load %arg1[%c0_11, %c0_12, %c0_13] : memref<2x8x128xf32, #tpu.memory_space<vmem>>, vector<1x8x128xf32>
    %9 = vector.shape_cast %8 : vector<1x8x128xf32> to vector<8x128xf32>
    %10 = arith.mulf %7, %7 : vector<8x128xf32>
    %cst_14 = arith.constant dense<0.000000e+00> : vector<128xf32>
    %11 = vector.multi_reduction <add>, %10, %cst_14 [0] : vector<8x128xf32> to vector<128xf32>
    %12 = vector.shape_cast %11 : vector<128xf32> to vector<1x128xf32>
    %cst_15 = arith.constant 9.99999997E-7 : f32
    %13 = vector.broadcast %cst_15 : f32 to vector<1x128xf32>
    %14 = arith.addf %12, %13 : vector<1x128xf32>
    %15 = math.rsqrt %14 : vector<1x128xf32>
    %16 = vector.broadcast %15 : vector<1x128xf32> to vector<8x128xf32>
    %17 = arith.mulf %7, %16 : vector<8x128xf32>
    %18 = arith.mulf %9, %9 : vector<8x128xf32>
    %cst_16 = arith.constant dense<0.000000e+00> : vector<128xf32>
    %19 = vector.multi_reduction <add>, %18, %cst_16 [0] : vector<8x128xf32> to vector<128xf32>
    %20 = vector.shape_cast %19 : vector<128xf32> to vector<1x128xf32>
    %cst_17 = arith.constant 9.99999997E-7 : f32
    %21 = vector.broadcast %cst_17 : f32 to vector<1x128xf32>
    %22 = arith.addf %20, %21 : vector<1x128xf32>
    %23 = math.rsqrt %22 : vector<1x128xf32>
    %24 = vector.broadcast %23 : vector<1x128xf32> to vector<8x128xf32>
    %25 = arith.mulf %9, %24 : vector<8x128xf32>
    %cst_18 = arith.constant dense<0.000000e+00> : vector<16x128xf32>
    %26 = tpu.matmul %0, %17, %cst_18 {dimension_numbers = #tpu.dot_dimension_numbers<[1], [0], [0], [1], [0, 0, 1, 1], [], []>} : vector<16x8xf32>, vector<8x128xf32>, vector<16x128xf32> -> vector<16x128xf32>
    %27 = vector.broadcast %1 : vector<16x1xf32> to vector<16x128xf32>
    %28 = arith.addf %26, %27 : vector<16x128xf32>
    %29 = math.tanh %28 : vector<16x128xf32>
    %cst_19 = arith.constant dense<0.000000e+00> : vector<16x128xf32>
    %30 = tpu.matmul %2, %25, %cst_19 {dimension_numbers = #tpu.dot_dimension_numbers<[1], [0], [0], [1], [0, 0, 1, 1], [], []>} : vector<16x8xf32>, vector<8x128xf32>, vector<16x128xf32> -> vector<16x128xf32>
    %31 = vector.broadcast %3 : vector<16x1xf32> to vector<16x128xf32>
    %32 = arith.addf %30, %31 : vector<16x128xf32>
    %33 = math.tanh %32 : vector<16x128xf32>
    %34 = vector.extract_strided_slice %29 {offsets = [0, 0], sizes = [8, 128], strides = [1, 1]} : vector<16x128xf32> to vector<8x128xf32>
    %35 = vector.extract_strided_slice %29 {offsets = [8, 0], sizes = [8, 128], strides = [1, 1]} : vector<16x128xf32> to vector<8x128xf32>
    %36 = vector.extract_strided_slice %33 {offsets = [0, 0], sizes = [8, 128], strides = [1, 1]} : vector<16x128xf32> to vector<8x128xf32>
    %37 = vector.extract_strided_slice %33 {offsets = [8, 0], sizes = [8, 128], strides = [1, 1]} : vector<16x128xf32> to vector<8x128xf32>
    %cst_20 = arith.constant 5.000000e-01 : f32
    %38 = vector.broadcast %cst_20 : f32 to vector<8x128xf32>
    %39 = arith.mulf %38, %35 : vector<8x128xf32>
    %40 = math.exp %39 : vector<8x128xf32>
    %cst_21 = arith.constant 5.000000e-01 : f32
    %41 = vector.broadcast %cst_21 : f32 to vector<8x128xf32>
    %42 = arith.mulf %41, %37 : vector<8x128xf32>
    %43 = math.exp %42 : vector<8x128xf32>
    %c0_22 = arith.constant 0 : index
    %c0_23 = arith.constant 0 : index
    %c0_24 = arith.constant 0 : index
    %44 = vector.load %arg6[%c0_22, %c0_23, %c0_24] : memref<2x8x128xf32, #tpu.memory_space<vmem>>, vector<1x8x128xf32>
    %45 = vector.shape_cast %44 : vector<1x8x128xf32> to vector<8x128xf32>
    %46 = arith.mulf %45, %40 : vector<8x128xf32>
    %47 = arith.addf %46, %34 : vector<8x128xf32>
    %c0_25 = arith.constant 0 : index
    %c0_26 = arith.constant 0 : index
    %c0_27 = arith.constant 0 : index
    %48 = vector.load %arg7[%c0_25, %c0_26, %c0_27] : memref<2x8x128xf32, #tpu.memory_space<vmem>>, vector<1x8x128xf32>
    %49 = vector.shape_cast %48 : vector<1x8x128xf32> to vector<8x128xf32>
    %50 = arith.mulf %49, %43 : vector<8x128xf32>
    %51 = arith.addf %50, %36 : vector<8x128xf32>
    %c0_28 = arith.constant 0 : index
    %c0_29 = arith.constant 0 : index
    %c0_30 = arith.constant 0 : index
    %52 = vector.load %arg9[%c0_28, %c0_29, %c0_30] : memref<2x8x128xf32, #tpu.memory_space<vmem>>, vector<1x8x128xf32>
    %53 = vector.shape_cast %52 : vector<1x8x128xf32> to vector<8x128xf32>
    %54 = vector.shape_cast %47 : vector<8x128xf32> to vector<1x8x128xf32>
    tpu.vector_store %arg9[%c0_28, %c0_29, %c0_30], %54 {strides = array<i32>} : memref<2x8x128xf32, #tpu.memory_space<vmem>>, vector<1x8x128xf32>,
    %c0_31 = arith.constant 0 : index
    %c0_32 = arith.constant 0 : index
    %c0_33 = arith.constant 0 : index
    %55 = vector.load %arg10[%c0_31, %c0_32, %c0_33] : memref<2x8x128xf32, #tpu.memory_space<vmem>>, vector<1x8x128xf32>
    %56 = vector.shape_cast %55 : vector<1x8x128xf32> to vector<8x128xf32>
    %57 = vector.shape_cast %51 : vector<8x128xf32> to vector<1x8x128xf32>
    tpu.vector_store %arg10[%c0_31, %c0_32, %c0_33], %57 {strides = array<i32>} : memref<2x8x128xf32, #tpu.memory_space<vmem>>, vector<1x8x128xf32>,
    %58 = arith.negf %47 : vector<8x128xf32>
    %59 = math.exp %58 : vector<8x128xf32>
    %cst_34 = arith.constant 1.000000e+00 : f32
    %60 = vector.broadcast %cst_34 : f32 to vector<8x128xf32>
    %61 = arith.addf %60, %59 : vector<8x128xf32>
    %62 = arith.divf %60, %61 : vector<8x128xf32>
    %63 = arith.negf %51 : vector<8x128xf32>
    %64 = math.exp %63 : vector<8x128xf32>
    %cst_35 = arith.constant 1.000000e+00 : f32
    %65 = vector.broadcast %cst_35 : f32 to vector<8x128xf32>
    %66 = arith.addf %65, %64 : vector<8x128xf32>
    %67 = arith.divf %65, %66 : vector<8x128xf32>
    %68 = math.log %62 : vector<8x128xf32>
    %69 = math.log %67 : vector<8x128xf32>
    %cst_36 = arith.constant -1.000000e+02 : f32
    %70 = vector.broadcast %cst_36 : f32 to vector<8x128xf32>
    %71 = arith.maximumf %68, %70 : vector<8x128xf32>
    %cst_37 = arith.constant -1.000000e+02 : f32
    %72 = vector.broadcast %cst_37 : f32 to vector<8x128xf32>
    %73 = arith.maximumf %69, %72 : vector<8x128xf32>
    %74 = arith.subf %68, %47 : vector<8x128xf32>
    %cst_38 = arith.constant -1.000000e+02 : f32
    %75 = vector.broadcast %cst_38 : f32 to vector<8x128xf32>
    %76 = arith.maximumf %74, %75 : vector<8x128xf32>
    %77 = arith.subf %69, %51 : vector<8x128xf32>
    %cst_39 = arith.constant -1.000000e+02 : f32
    %78 = vector.broadcast %cst_39 : f32 to vector<8x128xf32>
    %79 = arith.maximumf %77, %78 : vector<8x128xf32>
    %80 = arith.mulf %67, %71 : vector<8x128xf32>
    %cst_40 = arith.constant 1.000000e+00 : f32
    %81 = vector.broadcast %cst_40 : f32 to vector<8x128xf32>
    %82 = arith.subf %81, %67 : vector<8x128xf32>
    %83 = arith.mulf %82, %76 : vector<8x128xf32>
    %84 = arith.addf %80, %83 : vector<8x128xf32>
    %cst_41 = arith.constant 0.000000e+00 : f32
    %85 = vector.broadcast %cst_41 : f32 to vector<8x128xf32>
    %86 = arith.subf %85, %84 : vector<8x128xf32>
    %87 = arith.mulf %62, %73 : vector<8x128xf32>
    %cst_42 = arith.constant 1.000000e+00 : f32
    %88 = vector.broadcast %cst_42 : f32 to vector<8x128xf32>
    %89 = arith.subf %88, %62 : vector<8x128xf32>
    %90 = arith.mulf %89, %79 : vector<8x128xf32>
    %91 = arith.addf %87, %90 : vector<8x128xf32>
    %92 = arith.subf %86, %91 : vector<8x128xf32>
    %93 = arith.mulf %40, %40 : vector<8x128xf32>
    %94 = arith.mulf %43, %43 : vector<8x128xf32>
    %95 = arith.mulf %93, %93 : vector<8x128xf32>
    %96 = arith.mulf %94, %94 : vector<8x128xf32>
    %97 = arith.subf %34, %36 : vector<8x128xf32>
    %98 = arith.mulf %97, %97 : vector<8x128xf32>
    %99 = arith.subf %37, %35 : vector<8x128xf32>
    %cst_43 = arith.constant 2.000000e+00 : f32
    %100 = vector.broadcast %cst_43 : f32 to vector<8x128xf32>
    %101 = arith.mulf %100, %95 : vector<8x128xf32>
    %102 = tpu.reciprocal %101 {approx = true} : vector<8x128xf32> -> vector<8x128xf32>
    %cst_44 = arith.constant 2.000000e+00 : f32
    %103 = vector.broadcast %cst_44 : f32 to vector<8x128xf32>
    %104 = arith.mulf %103, %96 : vector<8x128xf32>
    %105 = tpu.reciprocal %104 {approx = true} : vector<8x128xf32> -> vector<8x128xf32>
    %106 = arith.addf %95, %98 : vector<8x128xf32>
    %107 = arith.mulf %106, %105 : vector<8x128xf32>
    %108 = arith.addf %99, %107 : vector<8x128xf32>
    %cst_45 = arith.constant 5.000000e-01 : f32
    %109 = vector.broadcast %cst_45 : f32 to vector<8x128xf32>
    %110 = arith.subf %108, %109 : vector<8x128xf32>
    %cst_46 = arith.constant 0.000000e+00 : f32
    %111 = vector.broadcast %cst_46 : f32 to vector<8x128xf32>
    %112 = arith.subf %111, %99 : vector<8x128xf32>
    %113 = arith.addf %96, %98 : vector<8x128xf32>
    %114 = arith.mulf %113, %102 : vector<8x128xf32>
    %115 = arith.addf %112, %114 : vector<8x128xf32>
    %cst_47 = arith.constant 5.000000e-01 : f32
    %116 = vector.broadcast %cst_47 : f32 to vector<8x128xf32>
    %117 = arith.subf %115, %116 : vector<8x128xf32>
    %118 = arith.addf %110, %117 : vector<8x128xf32>
    %cst_48 = arith.constant dense<0.000000e+00> : vector<128xf32>
    %119 = vector.multi_reduction <add>, %92, %cst_48 [0] : vector<8x128xf32> to vector<128xf32>
    %120 = vector.shape_cast %119 : vector<128xf32> to vector<1x128xf32>
    %121 = arith.addf %4, %120 : vector<1x128xf32>
    %cst_49 = arith.constant dense<0.000000e+00> : vector<128xf32>
    %122 = vector.multi_reduction <add>, %118, %cst_49 [0] : vector<8x128xf32> to vector<128xf32>
    %123 = vector.shape_cast %122 : vector<128xf32> to vector<1x128xf32>
    %124 = arith.addf %5, %123 : vector<1x128xf32>
    %c1 = arith.constant 1 : index
    %c0_50 = arith.constant 0 : index
    %c0_51 = arith.constant 0 : index
    %125 = vector.load %arg0[%c1, %c0_50, %c0_51] : memref<2x8x128xf32, #tpu.memory_space<vmem>>, vector<1x8x128xf32>
    %126 = vector.shape_cast %125 : vector<1x8x128xf32> to vector<8x128xf32>
    %c1_52 = arith.constant 1 : index
    %c0_53 = arith.constant 0 : index
    %c0_54 = arith.constant 0 : index
    %127 = vector.load %arg1[%c1_52, %c0_53, %c0_54] : memref<2x8x128xf32, #tpu.memory_space<vmem>>, vector<1x8x128xf32>
    %128 = vector.shape_cast %127 : vector<1x8x128xf32> to vector<8x128xf32>
    %129 = arith.mulf %126, %126 : vector<8x128xf32>
    %cst_55 = arith.constant dense<0.000000e+00> : vector<128xf32>
    %130 = vector.multi_reduction <add>, %129, %cst_55 [0] : vector<8x128xf32> to vector<128xf32>
    %131 = vector.shape_cast %130 : vector<128xf32> to vector<1x128xf32>
    %cst_56 = arith.constant 9.99999997E-7 : f32
    %132 = vector.broadcast %cst_56 : f32 to vector<1x128xf32>
    %133 = arith.addf %131, %132 : vector<1x128xf32>
    %134 = math.rsqrt %133 : vector<1x128xf32>
    %135 = vector.broadcast %134 : vector<1x128xf32> to vector<8x128xf32>
    %136 = arith.mulf %126, %135 : vector<8x128xf32>
    %137 = arith.mulf %128, %128 : vector<8x128xf32>
    %cst_57 = arith.constant dense<0.000000e+00> : vector<128xf32>
    %138 = vector.multi_reduction <add>, %137, %cst_57 [0] : vector<8x128xf32> to vector<128xf32>
    %139 = vector.shape_cast %138 : vector<128xf32> to vector<1x128xf32>
    %cst_58 = arith.constant 9.99999997E-7 : f32
    %140 = vector.broadcast %cst_58 : f32 to vector<1x128xf32>
    %141 = arith.addf %139, %140 : vector<1x128xf32>
    %142 = math.rsqrt %141 : vector<1x128xf32>
    %143 = vector.broadcast %142 : vector<1x128xf32> to vector<8x128xf32>
    %144 = arith.mulf %128, %143 : vector<8x128xf32>
    %cst_59 = arith.constant dense<0.000000e+00> : vector<16x128xf32>
    %145 = tpu.matmul %0, %136, %cst_59 {dimension_numbers = #tpu.dot_dimension_numbers<[1], [0], [0], [1], [0, 0, 1, 1], [], []>} : vector<16x8xf32>, vector<8x128xf32>, vector<16x128xf32> -> vector<16x128xf32>
    %146 = vector.broadcast %1 : vector<16x1xf32> to vector<16x128xf32>
    %147 = arith.addf %145, %146 : vector<16x128xf32>
    %148 = math.tanh %147 : vector<16x128xf32>
    %cst_60 = arith.constant dense<0.000000e+00> : vector<16x128xf32>
    %149 = tpu.matmul %2, %144, %cst_60 {dimension_numbers = #tpu.dot_dimension_numbers<[1], [0], [0], [1], [0, 0, 1, 1], [], []>} : vector<16x8xf32>, vector<8x128xf32>, vector<16x128xf32> -> vector<16x128xf32>
    %150 = vector.broadcast %3 : vector<16x1xf32> to vector<16x128xf32>
    %151 = arith.addf %149, %150 : vector<16x128xf32>
    %152 = math.tanh %151 : vector<16x128xf32>
    %153 = vector.extract_strided_slice %148 {offsets = [0, 0], sizes = [8, 128], strides = [1, 1]} : vector<16x128xf32> to vector<8x128xf32>
    %154 = vector.extract_strided_slice %148 {offsets = [8, 0], sizes = [8, 128], strides = [1, 1]} : vector<16x128xf32> to vector<8x128xf32>
    %155 = vector.extract_strided_slice %152 {offsets = [0, 0], sizes = [8, 128], strides = [1, 1]} : vector<16x128xf32> to vector<8x128xf32>
    %156 = vector.extract_strided_slice %152 {offsets = [8, 0], sizes = [8, 128], strides = [1, 1]} : vector<16x128xf32> to vector<8x128xf32>
    %cst_61 = arith.constant 5.000000e-01 : f32
    %157 = vector.broadcast %cst_61 : f32 to vector<8x128xf32>
    %158 = arith.mulf %157, %154 : vector<8x128xf32>
    %159 = math.exp %158 : vector<8x128xf32>
    %cst_62 = arith.constant 5.000000e-01 : f32
    %160 = vector.broadcast %cst_62 : f32 to vector<8x128xf32>
    %161 = arith.mulf %160, %156 : vector<8x128xf32>
    %162 = math.exp %161 : vector<8x128xf32>
    %c1_63 = arith.constant 1 : index
    %c0_64 = arith.constant 0 : index
    %c0_65 = arith.constant 0 : index
    %163 = vector.load %arg6[%c1_63, %c0_64, %c0_65] : memref<2x8x128xf32, #tpu.memory_space<vmem>>, vector<1x8x128xf32>
    %164 = vector.shape_cast %163 : vector<1x8x128xf32> to vector<8x128xf32>
    %165 = arith.mulf %164, %159 : vector<8x128xf32>
    %166 = arith.addf %165, %153 : vector<8x128xf32>
    %c1_66 = arith.constant 1 : index
    %c0_67 = arith.constant 0 : index
    %c0_68 = arith.constant 0 : index
    %167 = vector.load %arg7[%c1_66, %c0_67, %c0_68] : memref<2x8x128xf32, #tpu.memory_space<vmem>>, vector<1x8x128xf32>
    %168 = vector.shape_cast %167 : vector<1x8x128xf32> to vector<8x128xf32>
    %169 = arith.mulf %168, %162 : vector<8x128xf32>
    %170 = arith.addf %169, %155 : vector<8x128xf32>
    %c1_69 = arith.constant 1 : index
    %c0_70 = arith.constant 0 : index
    %c0_71 = arith.constant 0 : index
    %171 = vector.load %arg9[%c1_69, %c0_70, %c0_71] : memref<2x8x128xf32, #tpu.memory_space<vmem>>, vector<1x8x128xf32>
    %172 = vector.shape_cast %171 : vector<1x8x128xf32> to vector<8x128xf32>
    %173 = vector.shape_cast %166 : vector<8x128xf32> to vector<1x8x128xf32>
    tpu.vector_store %arg9[%c1_69, %c0_70, %c0_71], %173 {strides = array<i32>} : memref<2x8x128xf32, #tpu.memory_space<vmem>>, vector<1x8x128xf32>,
    %c1_72 = arith.constant 1 : index
    %c0_73 = arith.constant 0 : index
    %c0_74 = arith.constant 0 : index
    %174 = vector.load %arg10[%c1_72, %c0_73, %c0_74] : memref<2x8x128xf32, #tpu.memory_space<vmem>>, vector<1x8x128xf32>
    %175 = vector.shape_cast %174 : vector<1x8x128xf32> to vector<8x128xf32>
    %176 = vector.shape_cast %170 : vector<8x128xf32> to vector<1x8x128xf32>
    tpu.vector_store %arg10[%c1_72, %c0_73, %c0_74], %176 {strides = array<i32>} : memref<2x8x128xf32, #tpu.memory_space<vmem>>, vector<1x8x128xf32>,
    %177 = arith.negf %166 : vector<8x128xf32>
    %178 = math.exp %177 : vector<8x128xf32>
    %cst_75 = arith.constant 1.000000e+00 : f32
    %179 = vector.broadcast %cst_75 : f32 to vector<8x128xf32>
    %180 = arith.addf %179, %178 : vector<8x128xf32>
    %181 = arith.divf %179, %180 : vector<8x128xf32>
    %182 = arith.negf %170 : vector<8x128xf32>
    %183 = math.exp %182 : vector<8x128xf32>
    %cst_76 = arith.constant 1.000000e+00 : f32
    %184 = vector.broadcast %cst_76 : f32 to vector<8x128xf32>
    %185 = arith.addf %184, %183 : vector<8x128xf32>
    %186 = arith.divf %184, %185 : vector<8x128xf32>
    %187 = math.log %181 : vector<8x128xf32>
    %188 = math.log %186 : vector<8x128xf32>
    %cst_77 = arith.constant -1.000000e+02 : f32
    %189 = vector.broadcast %cst_77 : f32 to vector<8x128xf32>
    %190 = arith.maximumf %187, %189 : vector<8x128xf32>
    %cst_78 = arith.constant -1.000000e+02 : f32
    %191 = vector.broadcast %cst_78 : f32 to vector<8x128xf32>
    %192 = arith.maximumf %188, %191 : vector<8x128xf32>
    %193 = arith.subf %187, %166 : vector<8x128xf32>
    %cst_79 = arith.constant -1.000000e+02 : f32
    %194 = vector.broadcast %cst_79 : f32 to vector<8x128xf32>
    %195 = arith.maximumf %193, %194 : vector<8x128xf32>
    %196 = arith.subf %188, %170 : vector<8x128xf32>
    %cst_80 = arith.constant -1.000000e+02 : f32
    %197 = vector.broadcast %cst_80 : f32 to vector<8x128xf32>
    %198 = arith.maximumf %196, %197 : vector<8x128xf32>
    %199 = arith.mulf %186, %190 : vector<8x128xf32>
    %cst_81 = arith.constant 1.000000e+00 : f32
    %200 = vector.broadcast %cst_81 : f32 to vector<8x128xf32>
    %201 = arith.subf %200, %186 : vector<8x128xf32>
    %202 = arith.mulf %201, %195 : vector<8x128xf32>
    %203 = arith.addf %199, %202 : vector<8x128xf32>
    %cst_82 = arith.constant 0.000000e+00 : f32
    %204 = vector.broadcast %cst_82 : f32 to vector<8x128xf32>
    %205 = arith.subf %204, %203 : vector<8x128xf32>
    %206 = arith.mulf %181, %192 : vector<8x128xf32>
    %cst_83 = arith.constant 1.000000e+00 : f32
    %207 = vector.broadcast %cst_83 : f32 to vector<8x128xf32>
    %208 = arith.subf %207, %181 : vector<8x128xf32>
    %209 = arith.mulf %208, %198 : vector<8x128xf32>
    %210 = arith.addf %206, %209 : vector<8x128xf32>
    %211 = arith.subf %205, %210 : vector<8x128xf32>
    %212 = arith.mulf %159, %159 : vector<8x128xf32>
    %213 = arith.mulf %162, %162 : vector<8x128xf32>
    %214 = arith.mulf %212, %212 : vector<8x128xf32>
    %215 = arith.mulf %213, %213 : vector<8x128xf32>
    %216 = arith.subf %153, %155 : vector<8x128xf32>
    %217 = arith.mulf %216, %216 : vector<8x128xf32>
    %218 = arith.subf %156, %154 : vector<8x128xf32>
    %cst_84 = arith.constant 2.000000e+00 : f32
    %219 = vector.broadcast %cst_84 : f32 to vector<8x128xf32>
    %220 = arith.mulf %219, %214 : vector<8x128xf32>
    %221 = tpu.reciprocal %220 {approx = true} : vector<8x128xf32> -> vector<8x128xf32>
    %cst_85 = arith.constant 2.000000e+00 : f32
    %222 = vector.broadcast %cst_85 : f32 to vector<8x128xf32>
    %223 = arith.mulf %222, %215 : vector<8x128xf32>
    %224 = tpu.reciprocal %223 {approx = true} : vector<8x128xf32> -> vector<8x128xf32>
    %225 = arith.addf %214, %217 : vector<8x128xf32>
    %226 = arith.mulf %225, %224 : vector<8x128xf32>
    %227 = arith.addf %218, %226 : vector<8x128xf32>
    %cst_86 = arith.constant 5.000000e-01 : f32
    %228 = vector.broadcast %cst_86 : f32 to vector<8x128xf32>
    %229 = arith.subf %227, %228 : vector<8x128xf32>
    %cst_87 = arith.constant 0.000000e+00 : f32
    %230 = vector.broadcast %cst_87 : f32 to vector<8x128xf32>
    %231 = arith.subf %230, %218 : vector<8x128xf32>
    %232 = arith.addf %215, %217 : vector<8x128xf32>
    %233 = arith.mulf %232, %221 : vector<8x128xf32>
    %234 = arith.addf %231, %233 : vector<8x128xf32>
    %cst_88 = arith.constant 5.000000e-01 : f32
    %235 = vector.broadcast %cst_88 : f32 to vector<8x128xf32>
    %236 = arith.subf %234, %235 : vector<8x128xf32>
    %237 = arith.addf %229, %236 : vector<8x128xf32>
    %cst_89 = arith.constant dense<0.000000e+00> : vector<128xf32>
    %238 = vector.multi_reduction <add>, %211, %cst_89 [0] : vector<8x128xf32> to vector<128xf32>
    %239 = vector.shape_cast %238 : vector<128xf32> to vector<1x128xf32>
    %240 = arith.addf %121, %239 : vector<1x128xf32>
    %cst_90 = arith.constant dense<0.000000e+00> : vector<128xf32>
    %241 = vector.multi_reduction <add>, %237, %cst_90 [0] : vector<8x128xf32> to vector<128xf32>
    %242 = vector.shape_cast %241 : vector<128xf32> to vector<1x128xf32>
    %243 = arith.addf %124, %242 : vector<1x128xf32>
    %244 = vector.shape_cast %240 : vector<1x128xf32> to vector<1x1x128xf32>
    %cst_91 = arith.constant dense<0.000000e+00> : vector<1xf32>
    %245 = vector.multi_reduction <add>, %244, %cst_91 [1, 2] : vector<1x1x128xf32> to vector<1xf32>
    %246 = vector.shape_cast %245 : vector<1xf32> to vector<1x1x1xf32>
    %247 = vector.extract %246[0, 0, 0] : f32 from vector<1x1x1xf32>
    %248 = vector.broadcast %247 : f32 to vector<1x1xf32>
    %249 = vector.shape_cast %243 : vector<1x128xf32> to vector<1x1x128xf32>
    %cst_92 = arith.constant dense<0.000000e+00> : vector<1xf32>
    %250 = vector.multi_reduction <add>, %249, %cst_92 [1, 2] : vector<1x1x128xf32> to vector<1xf32>
    %251 = vector.shape_cast %250 : vector<1xf32> to vector<1x1x1xf32>
    %252 = vector.extract %251[0, 0, 0] : f32 from vector<1x1x1xf32>
    %253 = vector.broadcast %252 : f32 to vector<1x1xf32>
    %cst_93 = arith.constant 4.8828125E-4 : f32
    %254 = vector.broadcast %cst_93 : f32 to vector<1x1xf32>
    %255 = arith.mulf %248, %254 : vector<1x1xf32>
    %cst_94 = arith.constant 6.250000e-02 : f32
    %256 = vector.broadcast %cst_94 : f32 to vector<1x1xf32>
    %257 = arith.mulf %253, %256 : vector<1x1xf32>
    %258 = arith.subf %255, %257 : vector<1x1xf32>
    %cst_95 = arith.constant 7.812500e-03 : f32
    %259 = vector.broadcast %cst_95 : f32 to vector<1x1xf32>
    %260 = arith.mulf %258, %259 : vector<1x1xf32>
    %c0_96 = arith.constant 0 : index
    %c0_97 = arith.constant 0 : index
    %261 = vector.load %arg8[%c0_96, %c0_97] : memref<1x1xf32, #tpu.memory_space<vmem>>, vector<1x1xf32>
    tpu.vector_store %arg8[%c0_96, %c0_97], %260 {strides = array<i32>} : memref<1x1xf32, #tpu.memory_space<vmem>>, vector<1x1xf32>,
    return
  }
}

</mosaic_0001>

<llo_original>
// kernel: tpu_custom_call.1
$region0: #{tpu_custom_call.1}
  #allocation0 [shape = 'u32[]', space=smem, size = 0x4, offset = 0x4, fixed_abs, tag = 'smem constant byte address 0x4 - core index']
  #allocation1 [shape = 'u32[72,128]{1,0:T(1,128)}', space=vmem, size = 0x9000, scoped, tag = 'internal scratch']
  %s0 = inlined_call_operand.vmem [shape: f32[2,8,128], index: 0, kind: input, shape index: {}]
  %s1 = inlined_call_operand.vmem [shape: f32[2,8,128], index: 1, kind: input, shape index: {}]
  %s2 = inlined_call_operand.vmem [shape: f32[16,8], index: 2, kind: input, shape index: {}]
  %s3 = inlined_call_operand.vmem [shape: f32[16,1], index: 3, kind: input, shape index: {}]
  %s4 = inlined_call_operand.vmem [shape: f32[16,8], index: 4, kind: input, shape index: {}]
  %s5 = inlined_call_operand.vmem [shape: f32[16,1], index: 5, kind: input, shape index: {}]
  %s6 = inlined_call_operand.vmem [shape: f32[2,8,128], index: 6, kind: input, shape index: {}]
  %s7 = inlined_call_operand.vmem [shape: f32[2,8,128], index: 7, kind: input, shape index: {}]
  %s8 = inlined_call_operand.hbm [shape: f32[1,1], index: 8, kind: output, shape index: {0}]
  %s9 = inlined_call_operand.hbm [shape: f32[2,8,128], index: 9, kind: output, shape index: {1}]
  %s10 = inlined_call_operand.hbm [shape: f32[2,8,128], index: 10, kind: output, shape index: {2}]
  %11 = xla_tuple %s8, %s9, %s10
  %s12 = sld [smem:[#allocation0]]
  $region58: #{tpu_custom_call.1} parent=0
    _
  %s14 = ssub.s32 1, %s12
  %s15 = scalar_select 0, %s14, %s12
  $region1: #{tpu_custom_call.1} parent=0
    #allocation2 [shape = 'u8[512]{0}', space=vmem, size = 0x400, scoped, tag = 'output window, operand 0, single buffered']
    #allocation3 [shape = 's32[1]{0}', space=sflag, size = 0x4, scoped, tag = 'scoped memory for tpu_custom_call.1']
    #allocation4 [shape = 'u8[8192]{0}', space=vmem, size = 0x2000, scoped, tag = 'output window, operand 1, single buffered']
    #allocation5 [shape = 's32[1]{0}', space=sflag, size = 0x4, scoped, tag = 'scoped memory for tpu_custom_call.1']
    #allocation6 [shape = 'u8[8192]{0}', space=vmem, size = 0x2000, scoped, tag = 'output window, operand 2, single buffered']
    %16 = vsyncpa [#allocation3], 0
    %17 = vsyncpa [#allocation5], 0
    // Predicated region
    $region2: #{tpu_custom_call.1} parent=1 // pred_check
      _
    $region3: #{tpu_custom_call.1} parent=1 // pred_check_branch
      %19 = sbr.rel (0) target = $region5
    $region4: #{tpu_custom_call.1} parent=1 // pred_region
      _
    $region5: #{tpu_custom_call.1} parent=1 // pred_fallthru
      _
    // Predicated region
    $region6: #{tpu_custom_call.1} parent=1 // pred_check
      _
    $region7: #{tpu_custom_call.1} parent=1 // pred_check_branch
      %21 = sbr.rel (0) target = $region9
    $region8: #{tpu_custom_call.1} parent=1 // pred_region
      _
    $region9: #{tpu_custom_call.1} parent=1 // pred_fallthru
      _
    // Predicated region
    $region10: #{tpu_custom_call.1} parent=1 // pred_check
      _
    $region11: #{tpu_custom_call.1} parent=1 // pred_check_branch
      %23 = sbr.rel (0) target = $region13
    $region12: #{tpu_custom_call.1} parent=1 // pred_region
      _
    $region13: #{tpu_custom_call.1} parent=1 // pred_fallthru
      _
    // Predicated region
    $region14: #{tpu_custom_call.1} parent=1 // pred_check
      _
    $region15: #{tpu_custom_call.1} parent=1 // pred_check_branch
      %25 = sbr.rel (0) target = $region17
    $region16: #{tpu_custom_call.1} parent=1 // pred_region
      _
    $region17: #{tpu_custom_call.1} parent=1 // pred_fallthru
      _
    // Predicated region
    $region18: #{tpu_custom_call.1} parent=1 // pred_check
      _
    $region19: #{tpu_custom_call.1} parent=1 // pred_check_branch
      %27 = sbr.rel (0) target = $region21
    $region20: #{tpu_custom_call.1} parent=1 // pred_region
      _
    $region21: #{tpu_custom_call.1} parent=1 // pred_fallthru
      _
    // Predicated region
    $region22: #{tpu_custom_call.1} parent=1 // pred_check
      _
    $region23: #{tpu_custom_call.1} parent=1 // pred_check_branch
      %29 = sbr.rel (0) target = $region25
    $region24: #{tpu_custom_call.1} parent=1 // pred_region
      _
    $region25: #{tpu_custom_call.1} parent=1 // pred_fallthru
      _
    // Predicated region
    $region26: #{tpu_custom_call.1} parent=1 // pred_check
      _
    $region27: #{tpu_custom_call.1} parent=1 // pred_check_branch
      %31 = sbr.rel (0) target = $region29
    $region28: #{tpu_custom_call.1} parent=1 // pred_region
      _
    $region29: #{tpu_custom_call.1} parent=1 // pred_fallthru
      _
    // Predicated region
    $region30: #{tpu_custom_call.1} parent=1 // pred_check
      _
    $region31: #{tpu_custom_call.1} parent=1 // pred_check_branch
      %33 = sbr.rel (0) target = $region33
    $region32: #{tpu_custom_call.1} parent=1 // pred_region
      _
    $region33: #{tpu_custom_call.1} parent=1 // pred_fallthru
      _
    %v34 = vld [vmem:[%s2] sm:$0xff]
    %v35 = vld [vmem:[%s2 + $0x8] sm:$0xff]
    %v36 = vld [vmem:[%s3] sm:$0xff]
    %v37 = vld [vmem:[%s3 + $0x8] sm:$0xff]
    %v38 = vld [vmem:[%s4] sm:$0xff]
    %v39 = vld [vmem:[%s4 + $0x8] sm:$0xff]
    %v40 = vld [vmem:[%s5] sm:$0xff]
    %v41 = vld [vmem:[%s5 + $0x8] sm:$0xff]
    %v42 = vld [vmem:[%s0] sm:$0xff]
    %v43 = vld [vmem:[%s1] sm:$0xff]
    %v44 = vmul.f32 %v42, %v42
    %v45 = vrot.slane %v44, 4
    %v46 = vadd.f32 %v44, %v45
    %v47 = vrot.slane %v46, 2
    %v48 = vadd.f32 %v46, %v47
    %v49 = vrot.slane %v48, 1
    %v50 = vadd.f32 %v48, %v49
    %v51 = vadd.f32 %v50, 1e-06
    %v52 = vrsqrt.pop %v51
    %v53 = vmul.f32 %v52, %v51
    %v54 = vmul.f32 %v53, %v52
    %v55 = vmul.f32 0.5, %v54
    %v56 = vsub.f32 1.5, %v55
    %v57 = vmul.f32 %v52, %v56
    %vm58 = vweird.f32 %v51
    %vm59 = vweird.f32 %v52
    %vm60 = vmor %vm58, %vm59
    %v61 = vsel %vm60, %v52, %v57
    %v62 = vmul.f32 %v42, %v61
    %v63 = vmul.f32 %v43, %v43
    %v64 = vrot.slane %v63, 4
    %v65 = vadd.f32 %v63, %v64
    %v66 = vrot.slane %v65, 2
    %v67 = vadd.f32 %v65, %v66
    %v68 = vrot.slane %v67, 1
    %v69 = vadd.f32 %v67, %v68
    %v70 = vadd.f32 %v69, 1e-06
    %v71 = vrsqrt.pop %v70
    %v72 = vmul.f32 %v71, %v70
    %v73 = vmul.f32 %v72, %v71
    %v74 = vmul.f32 0.5, %v73
    %v75 = vsub.f32 1.5, %v74
    %v76 = vmul.f32 %v71, %v75
    %vm77 = vweird.f32 %v70
    %vm78 = vweird.f32 %v71
    %vm79 = vmor %vm77, %vm78
    %v80 = vsel %vm79, %v71, %v76
    %v81 = vmul.f32 %v43, %v80
    %83 = vset.pattern.permute.xlu0 0
    %84 = vperm.xlu0 %83, %v36
    %v85 = vpop.permute.xlu0 %84
    %88 = vset.pattern.permute.xlu0 0
    %89 = vperm.xlu0 %88, %v37
    %v90 = vpop.permute.xlu0 %89
    %vm92 = vcmask 64512
    %v94 = vsel %vm92, %v34, 0
    %v97 = vsel %vm92, %v35, 0
    %99 = vmatpush.msra.mxu0 0.0
    %100 = vmatpush.msra.mxu0 0.0
    %101 = vmatpush.msra.mxu0 0.0
    %102 = vmatpush.msra.mxu0 0.0
    %103 = vmatpush.msra.mxu0 0.0
    %104 = vmatpush.msra.mxu0 0.0
    %105 = vmatpush.msra.mxu0 0.0
    %106 = vmatpush.msra.mxu0 0.0
    %107 = vmatpush.msra.mxu0 0.0
    %108 = vmatpush.msra.mxu0 0.0
    %109 = vmatpush.msra.mxu0 0.0
    %110 = vmatpush.msra.mxu0 0.0
    %111 = vmatpush.msra.mxu0 0.0
    %112 = vmatpush.msra.mxu0 0.0
    %113 = vmatpush.msra.mxu0 0.0
    %114 = vmatpush.msra.mxu0 %v62
    %115 = vmatmul.f32.gmra.mxu0 %v94
    %v116 = vpop.f32.mrf.mxu0
    %v117 = vadd.f32 %v85, %v116
    %118 = vmatmul.f32.gmra.mxu0 %v97
    %v119 = vpop.f32.mrf.mxu0
    %v120 = vadd.f32 %v90, %v119
    %121 = vdwg.mxu0
    %v122 = vtanh.pop %v117
    %v123 = vtanh.pop %v120
    %125 = vset.pattern.permute.xlu0 0
    %126 = vperm.xlu0 %125, %v40
    %v127 = vpop.permute.xlu0 %126
    %130 = vset.pattern.permute.xlu0 0
    %131 = vperm.xlu0 %130, %v41
    %v132 = vpop.permute.xlu0 %131
    %v135 = vsel %vm92, %v38, 0
    %v138 = vsel %vm92, %v39, 0
    %140 = vmatpush.msra.mxu0 0.0
    %141 = vmatpush.msra.mxu0 0.0
    %142 = vmatpush.msra.mxu0 0.0
    %143 = vmatpush.msra.mxu0 0.0
    %144 = vmatpush.msra.mxu0 0.0
    %145 = vmatpush.msra.mxu0 0.0
    %146 = vmatpush.msra.mxu0 0.0
    %147 = vmatpush.msra.mxu0 0.0
    %148 = vmatpush.msra.mxu0 0.0
    %149 = vmatpush.msra.mxu0 0.0
    %150 = vmatpush.msra.mxu0 0.0
    %151 = vmatpush.msra.mxu0 0.0
    %152 = vmatpush.msra.mxu0 0.0
    %153 = vmatpush.msra.mxu0 0.0
    %154 = vmatpush.msra.mxu0 0.0
    %155 = vmatpush.msra.mxu0 %v81
    %156 = vmatmul.f32.gmra.mxu0 %v135
    %v157 = vpop.f32.mrf.mxu0
    %v158 = vadd.f32 %v127, %v157
    %159 = vmatmul.f32.gmra.mxu0 %v138
    %v160 = vpop.f32.mrf.mxu0
    %v161 = vadd.f32 %v132, %v160
    %162 = vdwg.mxu0
    %v163 = vtanh.pop %v158
    %v164 = vtanh.pop %v161
    %v165 = vmul.f32 %v123, 0.5
    %v166 = vmul.f32 %v165, 1.442695
    %v167 = vpow.pop %v166
    %v168 = vmul.f32 %v164, 0.5
    %v169 = vmul.f32 %v168, 1.442695
    %v170 = vpow.pop %v169
    %v171 = vld [vmem:[%s6] sm:$0xff]
    %v172 = vmul.f32 %v171, %v167
    %v173 = vadd.f32 %v172, %v122
    %v174 = vld [vmem:[%s7] sm:$0xff]
    %v175 = vmul.f32 %v174, %v170
    %v176 = vadd.f32 %v175, %v163
    %177 = vst [vmem:[#allocation4] sm:$0xff] %v173
    %178 = vst [vmem:[#allocation6] sm:$0xff] %v176
    %v179 = vxor.u32 %v173, 2147483648
    %v180 = vmul.f32 %v179, 1.442695
    %v181 = vpow.pop %v180
    %v182 = vadd.f32 %v181, 1.0
    %v183 = vrcp.pop %v182
    %v184 = vmul.f32 %v182, %v183
    %v185 = vsub.f32 1.0, %v184
    %v186 = vmul.f32 %v183, %v185
    %v187 = vadd.f32 %v183, %v186
    %vm188 = vweird.f32 %v182
    %vm189 = vweird.f32 %v183
    %vm190 = vmor %vm188, %vm189
    %v191 = vsel %vm190, %v183, %v187
    %v192 = vand.u32 2147483647, %v182
    %vm193 = vcmp.eq.f32.partialorder %v192, 8.507059e+37
    %v194 = vand.u32 %v182, 2147483648
    %v195 = vor.u32 1.1754944e-38, %v194
    %v196 = vsel %vm193, %v195, %v191
    %v197 = vmul.f32 1.0, %v196
    %v198 = vxor.u32 %v176, 2147483648
    %v199 = vmul.f32 %v198, 1.442695
    %v200 = vpow.pop %v199
    %v201 = vadd.f32 %v200, 1.0
    %v202 = vrcp.pop %v201
    %v203 = vmul.f32 %v201, %v202
    %v204 = vsub.f32 1.0, %v203
    %v205 = vmul.f32 %v202, %v204
    %v206 = vadd.f32 %v202, %v205
    %vm207 = vweird.f32 %v201
    %vm208 = vweird.f32 %v202
    %vm209 = vmor %vm207, %vm208
    %v210 = vsel %vm209, %v202, %v206
    %v211 = vand.u32 2147483647, %v201
    %vm212 = vcmp.eq.f32.partialorder %v211, 8.507059e+37
    %v213 = vand.u32 %v201, 2147483648
    %v214 = vor.u32 1.1754944e-38, %v213
    %v215 = vsel %vm212, %v214, %v210
    %v216 = vmul.f32 1.0, %v215
    %v217 = vlog2.pop %v197
    %v218 = vmul.f32 %v217, 0.6931472
    %v219 = vlog2.pop %v216
    %v220 = vmul.f32 %v219, 0.6931472
    %v221 = vmax.f32 %v218, -100.0
    %v222 = vmax.f32 %v220, -100.0
    %v223 = vsub.f32 %v218, %v173
    %v224 = vmax.f32 %v223, -100.0
    %v225 = vsub.f32 %v220, %v176
    %v226 = vmax.f32 %v225, -100.0
    %v227 = vmul.f32 %v216, %v221
    %v228 = vsub.f32 1.0, %v216
    %v229 = vmul.f32 %v228, %v224
    %v230 = vadd.f32 %v227, %v229
    %v231 = vsub.f32 0.0, %v230
    %v232 = vmul.f32 %v197, %v222
    %v233 = vsub.f32 1.0, %v197
    %v234 = vmul.f32 %v233, %v226
    %v235 = vadd.f32 %v232, %v234
    %v236 = vsub.f32 %v231, %v235
    %v237 = vmul.f32 %v167, %v167
    %v238 = vmul.f32 %v170, %v170
    %v239 = vmul.f32 %v237, %v237
    %v240 = vmul.f32 %v238, %v238
    %v241 = vsub.f32 %v122, %v163
    %v242 = vmul.f32 %v241, %v241
    %v243 = vsub.f32 %v164, %v123
    %v244 = vmul.f32 %v239, 2.0
    %v245 = vrcp.pop %v244
    %v246 = vmul.f32 %v240, 2.0
    %v247 = vrcp.pop %v246
    %v248 = vadd.f32 %v239, %v242
    %v249 = vmul.f32 %v248, %v247
    %v250 = vadd.f32 %v243, %v249
    %v251 = vsub.f32 %v250, 0.5
    %v252 = vsub.f32 0.0, %v243
    %v253 = vadd.f32 %v240, %v242
    %v254 = vmul.f32 %v253, %v245
    %v255 = vadd.f32 %v252, %v254
    %v256 = vsub.f32 %v255, 0.5
    %v257 = vadd.f32 %v251, %v256
    %v258 = vrot.slane %v236, 4
    %v259 = vadd.f32 %v236, %v258
    %v260 = vrot.slane %v259, 2
    %v261 = vadd.f32 %v259, %v260
    %v262 = vrot.slane %v261, 1
    %v263 = vadd.f32 %v261, %v262
    %v264 = vadd.f32 %v263, 0.0
    %v265 = vrot.slane %v257, 4
    %v266 = vadd.f32 %v257, %v265
    %v267 = vrot.slane %v266, 2
    %v268 = vadd.f32 %v266, %v267
    %v269 = vrot.slane %v268, 1
    %v270 = vadd.f32 %v268, %v269
    %v271 = vadd.f32 %v270, 0.0
    %s272 = scalar_lea.vmem %s0, 8
    %v273 = vld [vmem:[%s272] sm:$0xff]
    %s274 = scalar_lea.vmem %s1, 8
    %v275 = vld [vmem:[%s274] sm:$0xff]
    %v276 = vmul.f32 %v273, %v273
    %v277 = vrot.slane %v276, 4
    %v278 = vadd.f32 %v276, %v277
    %v279 = vrot.slane %v278, 2
    %v280 = vadd.f32 %v278, %v279
    %v281 = vrot.slane %v280, 1
    %v282 = vadd.f32 %v280, %v281
    %v283 = vadd.f32 %v282, 1e-06
    %v284 = vrsqrt.pop %v283
    %v285 = vmul.f32 %v284, %v283
    %v286 = vmul.f32 %v285, %v284
    %v287 = vmul.f32 0.5, %v286
    %v288 = vsub.f32 1.5, %v287
    %v289 = vmul.f32 %v284, %v288
    %vm290 = vweird.f32 %v283
    %vm291 = vweird.f32 %v284
    %vm292 = vmor %vm290, %vm291
    %v293 = vsel %vm292, %v284, %v289
    %v294 = vmul.f32 %v273, %v293
    %v295 = vmul.f32 %v275, %v275
    %v296 = vrot.slane %v295, 4
    %v297 = vadd.f32 %v295, %v296
    %v298 = vrot.slane %v297, 2
    %v299 = vadd.f32 %v297, %v298
    %v300 = vrot.slane %v299, 1
    %v301 = vadd.f32 %v299, %v300
    %v302 = vadd.f32 %v301, 1e-06
    %v303 = vrsqrt.pop %v302
    %v304 = vmul.f32 %v303, %v302
    %v305 = vmul.f32 %v304, %v303
    %v306 = vmul.f32 0.5, %v305
    %v307 = vsub.f32 1.5, %v306
    %v308 = vmul.f32 %v303, %v307
    %vm309 = vweird.f32 %v302
    %vm310 = vweird.f32 %v303
    %vm311 = vmor %vm309, %vm310
    %v312 = vsel %vm311, %v303, %v308
    %v313 = vmul.f32 %v275, %v312
    %314 = vmatpush.msra.mxu0 0.0
    %315 = vmatpush.msra.mxu0 0.0
    %316 = vmatpush.msra.mxu0 0.0
    %317 = vmatpush.msra.mxu0 0.0
    %318 = vmatpush.msra.mxu0 0.0
    %319 = vmatpush.msra.mxu0 0.0
    %320 = vmatpush.msra.mxu0 0.0
    %321 = vmatpush.msra.mxu0 0.0
    %322 = vmatpush.msra.mxu0 0.0
    %323 = vmatpush.msra.mxu0 0.0
    %324 = vmatpush.msra.mxu0 0.0
    %325 = vmatpush.msra.mxu0 0.0
    %326 = vmatpush.msra.mxu0 0.0
    %327 = vmatpush.msra.mxu0 0.0
    %328 = vmatpush.msra.mxu0 0.0
    %329 = vmatpush.msra.mxu0 %v294
    %330 = vmatmul.f32.gmra.mxu0 %v94
    %v331 = vpop.f32.mrf.mxu0
    %v332 = vadd.f32 %v85, %v331
    %333 = vmatmul.f32.gmra.mxu0 %v97
    %v334 = vpop.f32.mrf.mxu0
    %v335 = vadd.f32 %v90, %v334
    %336 = vdwg.mxu0
    %v337 = vtanh.pop %v332
    %v338 = vtanh.pop %v335
    %339 = vmatpush.msra.mxu0 0.0
    %340 = vmatpush.msra.mxu0 0.0
    %341 = vmatpush.msra.mxu0 0.0
    %342 = vmatpush.msra.mxu0 0.0
    %343 = vmatpush.msra.mxu0 0.0
    %344 = vmatpush.msra.mxu0 0.0
    %345 = vmatpush.msra.mxu0 0.0
    %346 = vmatpush.msra.mxu0 0.0
    %347 = vmatpush.msra.mxu0 0.0
    %348 = vmatpush.msra.mxu0 0.0
    %349 = vmatpush.msra.mxu0 0.0
    %350 = vmatpush.msra.mxu0 0.0
    %351 = vmatpush.msra.mxu0 0.0
    %352 = vmatpush.msra.mxu0 0.0
    %353 = vmatpush.msra.mxu0 0.0
    %354 = vmatpush.msra.mxu0 %v313
    %355 = vmatmul.f32.gmra.mxu0 %v135
    %v356 = vpop.f32.mrf.mxu0
    %v357 = vadd.f32 %v127, %v356
    %358 = vmatmul.f32.gmra.mxu0 %v138
    %v359 = vpop.f32.mrf.mxu0
    %v360 = vadd.f32 %v132, %v359
    %361 = vdwg.mxu0
    %v362 = vtanh.pop %v357
    %v363 = vtanh.pop %v360
    %v364 = vmul.f32 %v338, 0.5
    %v365 = vmul.f32 %v364, 1.442695
    %v366 = vpow.pop %v365
    %v367 = vmul.f32 %v363, 0.5
    %v368 = vmul.f32 %v367, 1.442695
    %v369 = vpow.pop %v368
    %s370 = scalar_lea.vmem %s6, 8
    %v371 = vld [vmem:[%s370] sm:$0xff]
    %v372 = vmul.f32 %v371, %v366
    %v373 = vadd.f32 %v372, %v337
    %s374 = scalar_lea.vmem %s7, 8
    %v375 = vld [vmem:[%s374] sm:$0xff]
    %v376 = vmul.f32 %v375, %v369
    %v377 = vadd.f32 %v376, %v362
    %s378 = scalar_lea.vmem [#allocation4], 8
    %379 = vst [vmem:[%s378] sm:$0xff] %v373
    %s380 = scalar_lea.vmem [#allocation6], 8
    %381 = vst [vmem:[%s380] sm:$0xff] %v377
    %v382 = vxor.u32 %v373, 2147483648
    %v383 = vmul.f32 %v382, 1.442695
    %v384 = vpow.pop %v383
    %v385 = vadd.f32 %v384, 1.0
    %v386 = vrcp.pop %v385
    %v387 = vmul.f32 %v385, %v386
    %v388 = vsub.f32 1.0, %v387
    %v389 = vmul.f32 %v386, %v388
    %v390 = vadd.f32 %v386, %v389
    %vm391 = vweird.f32 %v385
    %vm392 = vweird.f32 %v386
    %vm393 = vmor %vm391, %vm392
    %v394 = vsel %vm393, %v386, %v390
    %v395 = vand.u32 2147483647, %v385
    %vm396 = vcmp.eq.f32.partialorder %v395, 8.507059e+37
    %v397 = vand.u32 %v385, 2147483648
    %v398 = vor.u32 1.1754944e-38, %v397
    %v399 = vsel %vm396, %v398, %v394
    %v400 = vmul.f32 1.0, %v399
    %v401 = vxor.u32 %v377, 2147483648
    %v402 = vmul.f32 %v401, 1.442695
    %v403 = vpow.pop %v402
    %v404 = vadd.f32 %v403, 1.0
    %v405 = vrcp.pop %v404
    %v406 = vmul.f32 %v404, %v405
    %v407 = vsub.f32 1.0, %v406
    %v408 = vmul.f32 %v405, %v407
    %v409 = vadd.f32 %v405, %v408
    %vm410 = vweird.f32 %v404
    %vm411 = vweird.f32 %v405
    %vm412 = vmor %vm410, %vm411
    %v413 = vsel %vm412, %v405, %v409
    %v414 = vand.u32 2147483647, %v404
    %vm415 = vcmp.eq.f32.partialorder %v414, 8.507059e+37
    %v416 = vand.u32 %v404, 2147483648
    %v417 = vor.u32 1.1754944e-38, %v416
    %v418 = vsel %vm415, %v417, %v413
    %v419 = vmul.f32 1.0, %v418
    %v420 = vlog2.pop %v400
    %v421 = vmul.f32 %v420, 0.6931472
    %v422 = vlog2.pop %v419
    %v423 = vmul.f32 %v422, 0.6931472
    %v424 = vmax.f32 %v421, -100.0
    %v425 = vmax.f32 %v423, -100.0
    %v426 = vsub.f32 %v421, %v373
    %v427 = vmax.f32 %v426, -100.0
    %v428 = vsub.f32 %v423, %v377
    %v429 = vmax.f32 %v428, -100.0
    %v430 = vmul.f32 %v419, %v424
    %v431 = vsub.f32 1.0, %v419
    %v432 = vmul.f32 %v431, %v427
    %v433 = vadd.f32 %v430, %v432
    %v434 = vsub.f32 0.0, %v433
    %v435 = vmul.f32 %v400, %v425
    %v436 = vsub.f32 1.0, %v400
    %v437 = vmul.f32 %v436, %v429
    %v438 = vadd.f32 %v435, %v437
    %v439 = vsub.f32 %v434, %v438
    %v440 = vmul.f32 %v366, %v366
    %v441 = vmul.f32 %v369, %v369
    %v442 = vmul.f32 %v440, %v440
    %v443 = vmul.f32 %v441, %v441
    %v444 = vsub.f32 %v337, %v362
    %v445 = vmul.f32 %v444, %v444
    %v446 = vsub.f32 %v363, %v338
    %v447 = vmul.f32 %v442, 2.0
    %v448 = vrcp.pop %v447
    %v449 = vmul.f32 %v443, 2.0
    %v450 = vrcp.pop %v449
    %v451 = vadd.f32 %v442, %v445
    %v452 = vmul.f32 %v451, %v450
    %v453 = vadd.f32 %v446, %v452
    %v454 = vsub.f32 %v453, 0.5
    %v455 = vsub.f32 0.0, %v446
    %v456 = vadd.f32 %v443, %v445
    %v457 = vmul.f32 %v456, %v448
    %v458 = vadd.f32 %v455, %v457
    %v459 = vsub.f32 %v458, 0.5
    %v460 = vadd.f32 %v454, %v459
    %v461 = vrot.slane %v439, 4
    %v462 = vadd.f32 %v439, %v461
    %v463 = vrot.slane %v462, 2
    %v464 = vadd.f32 %v462, %v463
    %v465 = vrot.slane %v464, 1
    %v466 = vadd.f32 %v464, %v465
    %v467 = vadd.f32 %v264, %v466
    %v468 = vrot.slane %v460, 4
    %v469 = vadd.f32 %v460, %v468
    %v470 = vrot.slane %v469, 2
    %v471 = vadd.f32 %v469, %v470
    %v472 = vrot.slane %v471, 1
    %v473 = vadd.f32 %v471, %v472
    %v474 = vadd.f32 %v271, %v473
    %vm475 = vcmask 1040384
    %v476 = vsel %vm475, %v467, 0.0
    %477 = vadd.xlane.f32.xlu0 %v476
    %v478 = vpop.xlane.xlu0 %477
    %v479 = vrot.slane %v478, 4
    %v480 = vadd.f32 %v478, %v479
    %v481 = vrot.slane %v480, 2
    %v482 = vadd.f32 %v480, %v481
    %v483 = vrot.slane %v482, 1
    %v484 = vadd.f32 %v482, %v483
    %s485 = vtos %v484
    %v486 = vstv %s485
    %v487 = vsel %vm475, %v474, 0.0
    %488 = vadd.xlane.f32.xlu0 %v487
    %v489 = vpop.xlane.xlu0 %488
    %v490 = vrot.slane %v489, 4
    %v491 = vadd.f32 %v489, %v490
    %v492 = vrot.slane %v491, 2
    %v493 = vadd.f32 %v491, %v492
    %v494 = vrot.slane %v493, 1
    %v495 = vadd.f32 %v493, %v494
    %s496 = vtos %v495
    %v497 = vstv %s496
    %v498 = vmul.f32 %v486, 0.00048828125
    %v499 = vmul.f32 %v497, 0.0625
    %v500 = vsub.f32 %v498, %v499
    %v501 = vmul.f32 %v500, 0.0078125
    %vm502 = vcmask 0
    %503 = vst.msk [vmem:[#allocation2] sm:$0x1] %vm502, %v501
    // Predicated region
    $region34: #{tpu_custom_call.1} parent=1 // pred_check
      _
    $region35: #{tpu_custom_call.1} parent=1 // pred_check_branch
      %505 = sbr.rel (0) target = $region37
    $region36: #{tpu_custom_call.1} parent=1 // pred_region
      %507 = vsyncadd [#allocation3], 0
      %s509 = sshll.u32 [#allocation2], 4
      %s510 = int_to_ptr.vmem [resolvable:$true] %s509
      %s511 = sshll.u32 %s8, 4
      %s512 = int_to_ptr.hbm [resolvable:$true] %s511
      %514 = dma.vmem_to_hbm [thread:$0]  %s510, 16, %s512, [#allocation3]
    $region37: #{tpu_custom_call.1} parent=1 // pred_fallthru
      _
    // Predicated region
    $region38: #{tpu_custom_call.1} parent=1 // pred_check
      _
    $region39: #{tpu_custom_call.1} parent=1 // pred_check_branch
      %516 = sbr.rel (0) target = $region41
    $region40: #{tpu_custom_call.1} parent=1 // pred_region
      %518 = vsyncadd [#allocation5], 0
      %s519 = sshll.u32 [#allocation4], 4
      %s520 = int_to_ptr.vmem [resolvable:$true] %s519
      %s521 = sshll.u32 %s9, 4
      %s522 = int_to_ptr.hbm [resolvable:$true] %s521
      %527 = dma.vmem_to_hbm [thread:$0]  %s520, 256, %s522, [#allocation5], 128, 128, 8
    $region41: #{tpu_custom_call.1} parent=1 // pred_fallthru
      _
    // Predicated region
    $region42: #{tpu_custom_call.1} parent=1 // pred_check
      _
    $region43: #{tpu_custom_call.1} parent=1 // pred_check_branch
      %529 = sbr.rel (0) target = $region45
    $region44: #{tpu_custom_call.1} parent=1 // pred_region
      %531 = vsyncadd [#allocation5], 0
      %s532 = sshll.u32 [#allocation6], 4
      %s533 = int_to_ptr.vmem [resolvable:$true] %s532
      %s534 = sshll.u32 %s10, 4
      %s535 = int_to_ptr.hbm [resolvable:$true] %s534
      %540 = dma.vmem_to_hbm [thread:$0]  %s533, 256, %s535, [#allocation5], 128, 128, 8
    $region45: #{tpu_custom_call.1} parent=1 // pred_fallthru
      _
    // Predicated region
    $region46: #{tpu_custom_call.1} parent=1 // pred_check
      _
    $region47: #{tpu_custom_call.1} parent=1 // pred_check_branch
      %542 = sbr.rel (0) target = $region49
    $region48: #{tpu_custom_call.1} parent=1 // pred_region
      %544 = dma.done [#allocation3], 16
    $region49: #{tpu_custom_call.1} parent=1 // pred_fallthru
      _
    // Predicated region
    $region50: #{tpu_custom_call.1} parent=1 // pred_check
      _
    $region51: #{tpu_custom_call.1} parent=1 // pred_check_branch
      %546 = sbr.rel (0) target = $region53
    $region52: #{tpu_custom_call.1} parent=1 // pred_region
      %548 = dma.done [#allocation5], 256
    $region53: #{tpu_custom_call.1} parent=1 // pred_fallthru
      _
    // Predicated region
    $region54: #{tpu_custom_call.1} parent=1 // pred_check
      _
    $region55: #{tpu_custom_call.1} parent=1 // pred_check_branch
      %550 = sbr.rel (0) target = $region57
    $region56: #{tpu_custom_call.1} parent=1 // pred_region
      %552 = dma.done [#allocation5], 256
    $region57: #{tpu_custom_call.1} parent=1 // pred_fallthru
      _
    %553 = vsyncpa [#allocation3], 1
    %554 = vsyncpa [#allocation5], 1

</llo_original>
